<compile_context>
chip_gen: v5e
topology: v5e:2x2
jax: 0.10.0
libtpu: 0.0.40
codegen_flags: <defaults>
</compile_context>

<pallas_src>
import functools

import jax
import jax.numpy as jnp
from jax.experimental import pallas as pl
from jax.experimental.pallas import tpu as pltpu


def policy_net_kernel(x_ref, w1_ref, b1_ref, w2_ref, b2_ref, out_ref, *,
                      action_num, matmul_dtype):
    # In-kernel cast of the activation tile (hidden under DMA/matmul; avoids a
    # separate HBM read+write of x in the wrapper).
    x = x_ref[...].astype(matmul_dtype)                                  # [TB, S]
    h = jnp.dot(x, w1_ref[...],
                preferred_element_type=jnp.float32) + b1_ref[...]        # [TB, H] f32
    h = jnp.maximum(h, 0.0)                                              # ReLU (VPU, f32)
    logits = jnp.dot(h.astype(w2_ref.dtype), w2_ref[...],
                     preferred_element_type=jnp.float32) + b2_ref[...]   # [TB, A_pad] f32
    # Softmax only over the real action columns; exact divide so every row
    # sums to 1.0 to f32 precision (downstream Categorical sampling).
    logits = logits[:, :action_num]                                      # [TB, A]
    m = jnp.max(logits, axis=-1, keepdims=True)
    e = jnp.exp(logits - m)
    denom = jnp.sum(e, axis=-1, keepdims=True)
    out_ref[...] = (e / denom).astype(out_ref.dtype)


def policy_net_forward(x, w1, b1, w2, b2, *, batch_tile=1024,
                       matmul_dtype=jnp.float32):
    """Forward pass of PolicyNet.

    x:  [B, S]          w1: [S, H]   b1: [1, H]
    w2: [H, A]          b2: [1, A]
    Returns action probabilities [B, A] (f32), softmax over axis 1.
    """
    B, S = x.shape
    H = w1.shape[1]
    A = w2.shape[1]
    A_pad = ((A + 127) // 128) * 128  # lane-aligned N for the second matmul

    # Weights are tiny and call-invariant: pad/cast them once in the wrapper.
    # Padded w2 columns are zero; they never reach the softmax (sliced off).
    w1m = w1.astype(matmul_dtype)
    w2m = jnp.pad(w2, ((0, 0), (0, A_pad - A))).astype(matmul_dtype)
    b1f = b1.astype(jnp.float32)
    b2f = jnp.pad(b2, ((0, 0), (0, A_pad - A))).astype(jnp.float32)

    kernel = functools.partial(policy_net_kernel, action_num=A,
                               matmul_dtype=matmul_dtype)

    if B <= batch_tile:
        # Single invocation, no grid, no pipeline scaffolding.
        return pl.pallas_call(
            kernel,
            out_shape=jax.ShapeDtypeStruct((B, A), jnp.float32),
            in_specs=[pl.BlockSpec(memory_space=pltpu.MemorySpace.VMEM)] * 5,
            out_specs=pl.BlockSpec(memory_space=pltpu.MemorySpace.VMEM),
        )(x, w1m, b1f, w2m, b2f)

    # Batch-tiled path (B > batch_tile  =>  at least 2 grid steps, so the
    # "parallel" axis can feed both v7x TensorCores).  No padding of x: the
    # ragged last block is clipped by Pallas; rows are independent so the
    # garbage tail rows of the final input tile are harmless and never stored.
    nb = pl.cdiv(B, batch_tile)
    return pl.pallas_call(
        kernel,
        out_shape=jax.ShapeDtypeStruct((B, A), jnp.float32),
        grid=(nb,),
        in_specs=[
            pl.BlockSpec((batch_tile, S), lambda i: (i, 0)),  # x tile
            pl.BlockSpec((S, H), lambda i: (0, 0)),           # w1 resident
            pl.BlockSpec((1, H), lambda i: (0, 0)),           # b1 resident
            pl.BlockSpec((H, A_pad), lambda i: (0, 0)),       # w2 resident
            pl.BlockSpec((1, A_pad), lambda i: (0, 0)),       # b2 resident
        ],
        out_specs=pl.BlockSpec((batch_tile, A), lambda i: (i, 0)),
        compiler_params=pltpu.CompilerParams(
            dimension_semantics=("parallel",)),
    )(x, w1m, b1f, w2m, b2f)


def init_params(key, state_dim, action_num, hidden_dim):
    # Deterministic synthetic init (uniform like nn.Linear's default range).
    k1, k2, k3, k4 = jax.random.split(key, 4)
    lim1 = 1.0 / jnp.sqrt(state_dim)
    lim2 = 1.0 / jnp.sqrt(hidden_dim)
    w1 = jax.random.uniform(k1, (state_dim, hidden_dim), jnp.float32, -lim1, lim1)
    b1 = jax.random.uniform(k2, (1, hidden_dim), jnp.float32, -lim1, lim1)
    w2 = jax.random.uniform(k3, (hidden_dim, action_num), jnp.float32, -lim2, lim2)
    b2 = jax.random.uniform(k4, (1, action_num), jnp.float32, -lim2, lim2)
    return w1, b1, w2, b2


def _reference(x, w1, b1, w2, b2):
    h = jnp.maximum(x @ w1 + b1, 0.0)
    return jax.nn.softmax(h @ w2 + b2, axis=1)


if __name__ == "__main__":
    state_dim, action_num, hidden_dim = 16, 4, 32

    key = jax.random.PRNGKey(0)
    kx, kx2, kp = jax.random.split(key, 3)
    w1, b1, w2, b2 = init_params(kp, state_dim, action_num, hidden_dim)

    # --- Small batch: gridless path (f32) ------------------------------------
    x_small = jax.random.normal(kx, (8, state_dim), jnp.float32)
    probs_small = jax.block_until_ready(
        policy_net_forward(x_small, w1, b1, w2, b2))
    ref_small = _reference(x_small, w1, b1, w2, b2)
    assert probs_small.shape == (8, action_num)
    assert jnp.allclose(probs_small, ref_small, atol=1e-3, rtol=1e-3)
    assert jnp.allclose(jnp.sum(probs_small, axis=1), 1.0, atol=1e-4)

    # --- Larger ragged batch: tiled "parallel" path (f32), B=300, TB=128 -----
    x_big = jax.random.normal(kx2, (300, state_dim), jnp.float32)
    probs_big = jax.block_until_ready(
        policy_net_forward(x_big, w1, b1, w2, b2, batch_tile=128))
    ref_big = _reference(x_big, w1, b1, w2, b2)
    assert probs_big.shape == (300, action_num)
    assert jnp.allclose(probs_big, ref_big, atol=1e-3, rtol=1e-3)
    assert jnp.allclose(jnp.sum(probs_big, axis=1), 1.0, atol=1e-4)

    # --- bf16 MXU inputs (f32 accumulate) on the tiled path -------------------
    probs_bf16 = jax.block_until_ready(
        policy_net_forward(x_big, w1, b1, w2, b2, batch_tile=128,
                           matmul_dtype=jnp.bfloat16))
    assert probs_bf16.shape == (300, action_num)
    assert jnp.allclose(probs_bf16, ref_big, atol=3e-2)
    assert jnp.allclose(jnp.sum(probs_bf16, axis=1), 1.0, atol=1e-4)

    print("KERNEL_OK")
</pallas_src>

<mosaic_0001>
module attributes {stable_mosaic.version = 11 : i64} {
  func.func @policy_net_kernel(%arg0: memref<8x16xf32, #tpu.memory_space<vmem>>, %arg1: memref<16x32xf32, #tpu.memory_space<vmem>>, %arg2: memref<1x32xf32, #tpu.memory_space<vmem>>, %arg3: memref<32x128xf32, #tpu.memory_space<vmem>>, %arg4: memref<1x128xf32, #tpu.memory_space<vmem>>, %arg5: memref<8x4xf32, #tpu.memory_space<vmem>>) attributes {dimension_semantics = [], scalar_prefetch = 0 : i64, scratch_operands = 0 : i64, tpu.core_type = #tpu.core_type<tc>} {
    %c0 = arith.constant 0 : index
    %c0_0 = arith.constant 0 : index
    %0 = vector.load %arg0[%c0, %c0_0] : memref<8x16xf32, #tpu.memory_space<vmem>>, vector<8x16xf32>
    %c0_1 = arith.constant 0 : index
    %c0_2 = arith.constant 0 : index
    %1 = vector.load %arg1[%c0_1, %c0_2] : memref<16x32xf32, #tpu.memory_space<vmem>>, vector<16x32xf32>
    %cst = arith.constant dense<0.000000e+00> : vector<8x32xf32>
    %2 = tpu.matmul %0, %1, %cst {dimension_numbers = #tpu.dot_dimension_numbers<[1], [0], [0], [1], [0, 0, 1, 1], [], []>} : vector<8x16xf32>, vector<16x32xf32>, vector<8x32xf32> -> vector<8x32xf32>
    %c0_3 = arith.constant 0 : index
    %c0_4 = arith.constant 0 : index
    %3 = vector.load %arg2[%c0_3, %c0_4] : memref<1x32xf32, #tpu.memory_space<vmem>>, vector<1x32xf32>
    %4 = vector.broadcast %3 : vector<1x32xf32> to vector<8x32xf32>
    %5 = arith.addf %2, %4 : vector<8x32xf32>
    %cst_5 = arith.constant 0.000000e+00 : f32
    %6 = vector.broadcast %cst_5 : f32 to vector<8x32xf32>
    %7 = arith.maximumf %5, %6 : vector<8x32xf32>
    %c0_6 = arith.constant 0 : index
    %c0_7 = arith.constant 0 : index
    %8 = vector.load %arg3[%c0_6, %c0_7] : memref<32x128xf32, #tpu.memory_space<vmem>>, vector<32x128xf32>
    %cst_8 = arith.constant dense<0.000000e+00> : vector<8x128xf32>
    %9 = tpu.matmul %7, %8, %cst_8 {dimension_numbers = #tpu.dot_dimension_numbers<[1], [0], [0], [1], [0, 0, 1, 1], [], []>} : vector<8x32xf32>, vector<32x128xf32>, vector<8x128xf32> -> vector<8x128xf32>
    %c0_9 = arith.constant 0 : index
    %c0_10 = arith.constant 0 : index
    %10 = vector.load %arg4[%c0_9, %c0_10] : memref<1x128xf32, #tpu.memory_space<vmem>>, vector<1x128xf32>
    %11 = vector.broadcast %10 : vector<1x128xf32> to vector<8x128xf32>
    %12 = arith.addf %9, %11 : vector<8x128xf32>
    %13 = vector.extract_strided_slice %12 {offsets = [0, 0], sizes = [8, 4], strides = [1, 1]} : vector<8x128xf32> to vector<8x4xf32>
    %cst_11 = arith.constant dense<0xFF800000> : vector<8xf32>
    %14 = vector.multi_reduction <maximumf>, %13, %cst_11 [1] : vector<8x4xf32> to vector<8xf32>
    %15 = vector.shape_cast %14 : vector<8xf32> to vector<8x1xf32>
    %16 = vector.broadcast %15 : vector<8x1xf32> to vector<8x4xf32>
    %17 = arith.subf %13, %16 : vector<8x4xf32>
    %18 = math.exp %17 : vector<8x4xf32>
    %cst_12 = arith.constant dense<0.000000e+00> : vector<8xf32>
    %19 = vector.multi_reduction <add>, %18, %cst_12 [1] : vector<8x4xf32> to vector<8xf32>
    %20 = vector.shape_cast %19 : vector<8xf32> to vector<8x1xf32>
    %21 = vector.broadcast %20 : vector<8x1xf32> to vector<8x4xf32>
    %22 = arith.divf %18, %21 : vector<8x4xf32>
    %c0_13 = arith.constant 0 : index
    %c0_14 = arith.constant 0 : index
    %23 = vector.load %arg5[%c0_13, %c0_14] : memref<8x4xf32, #tpu.memory_space<vmem>>, vector<8x4xf32>
    tpu.vector_store %arg5[%c0_13, %c0_14], %22 {strides = array<i32>} : memref<8x4xf32, #tpu.memory_space<vmem>>, vector<8x4xf32>,
    return
  }
}

</mosaic_0001>

<llo_original>
// kernel: tpu_custom_call.1
$region0: #{tpu_custom_call.1}
  #allocation0 [shape = 'u32[]', space=smem, size = 0x4, offset = 0x4, fixed_abs, tag = 'smem constant byte address 0x4 - core index']
  #allocation1 [shape = 'u32[72,128]{1,0:T(1,128)}', space=vmem, size = 0x9000, scoped, tag = 'internal scratch']
  %s0 = inlined_call_operand.hbm [shape: f32[8,16], index: 0, kind: input, shape index: {}]
  %s1 = inlined_call_operand.hbm [shape: f32[16,32], index: 1, kind: input, shape index: {}]
  %s2 = inlined_call_operand.vmem [shape: f32[1,32], index: 2, kind: input, shape index: {}]
  %s3 = inlined_call_operand.hbm [shape: f32[32,128], index: 3, kind: input, shape index: {}]
  %s4 = inlined_call_operand.vmem [shape: f32[1,128], index: 4, kind: input, shape index: {}]
  %s5 = inlined_call_operand.vmem [shape: f32[8,4], index: 5, kind: output, shape index: {}]
  %s6 = sld [smem:[#allocation0]]
  $region42: #{tpu_custom_call.1} parent=0
    _
  %s8 = ssub.s32 1, %s6
  %s9 = scalar_select 0, %s8, %s6
  $region1: #{tpu_custom_call.1} parent=0
    #allocation2 [shape = 'u8[4096]{0}', space=vmem, size = 0x1000, scoped, tag = 'input window, operand 0, single buffered']
    #allocation3 [shape = 's32[1]{0}', space=sflag, size = 0x4, scoped, tag = 'scoped memory for tpu_custom_call.1']
    #allocation4 [shape = 'u8[8192]{0}', space=vmem, size = 0x2000, scoped, tag = 'input window, operand 1, single buffered']
    #allocation5 [shape = 's32[1]{0}', space=sflag, size = 0x4, scoped, tag = 'scoped memory for tpu_custom_call.1']
    #allocation6 [shape = 'u8[16384]{0}', space=vmem, size = 0x4000, scoped, tag = 'input window, operand 3, single buffered']
    %10 = vsyncpa [#allocation3], 0
    %11 = vsyncpa [#allocation5], 0
    // Predicated region
    $region2: #{tpu_custom_call.1} parent=1 // pred_check
      _
    $region3: #{tpu_custom_call.1} parent=1 // pred_check_branch
      %13 = sbr.rel (0) target = $region5
    $region4: #{tpu_custom_call.1} parent=1 // pred_region
      %15 = vsyncadd [#allocation3], 0
      %s17 = sshll.u32 %s0, 4
      %s18 = int_to_ptr.hbm [resolvable:$true] %s17
      %s19 = sshll.u32 [#allocation2], 4
      %s20 = int_to_ptr.vmem [resolvable:$true] %s19
      %22 = dma.hbm_to_vmem [thread:$0]  %s18, 128, %s20, [#allocation3]
    $region5: #{tpu_custom_call.1} parent=1 // pred_fallthru
      _
    // Predicated region
    $region6: #{tpu_custom_call.1} parent=1 // pred_check
      _
    $region7: #{tpu_custom_call.1} parent=1 // pred_check_branch
      %24 = sbr.rel (0) target = $region9
    $region8: #{tpu_custom_call.1} parent=1 // pred_region
      %26 = vsyncadd [#allocation5], 0
      %s27 = sshll.u32 %s1, 4
      %s28 = int_to_ptr.hbm [resolvable:$true] %s27
      %s29 = sshll.u32 [#allocation4], 4
      %s30 = int_to_ptr.vmem [resolvable:$true] %s29
      %35 = dma.hbm_to_vmem [thread:$0]  %s28, 256, %s30, [#allocation5], 128, 128, 8
    $region9: #{tpu_custom_call.1} parent=1 // pred_fallthru
      _
    // Predicated region
    $region10: #{tpu_custom_call.1} parent=1 // pred_check
      _
    $region11: #{tpu_custom_call.1} parent=1 // pred_check_branch
      %37 = sbr.rel (0) target = $region13
    $region12: #{tpu_custom_call.1} parent=1 // pred_region
      _
    $region13: #{tpu_custom_call.1} parent=1 // pred_fallthru
      _
    // Predicated region
    $region14: #{tpu_custom_call.1} parent=1 // pred_check
      _
    $region15: #{tpu_custom_call.1} parent=1 // pred_check_branch
      %39 = sbr.rel (0) target = $region17
    $region16: #{tpu_custom_call.1} parent=1 // pred_region
      %41 = vsyncadd [#allocation5], 0
      %s42 = sshll.u32 %s3, 4
      %s43 = int_to_ptr.hbm [resolvable:$true] %s42
      %s44 = sshll.u32 [#allocation6], 4
      %s45 = int_to_ptr.vmem [resolvable:$true] %s44
      %50 = dma.hbm_to_vmem [thread:$0]  %s43, 512, %s45, [#allocation5], 128, 128, 8
    $region17: #{tpu_custom_call.1} parent=1 // pred_fallthru
      _
    // Predicated region
    $region18: #{tpu_custom_call.1} parent=1 // pred_check
      _
    $region19: #{tpu_custom_call.1} parent=1 // pred_check_branch
      %52 = sbr.rel (0) target = $region21
    $region20: #{tpu_custom_call.1} parent=1 // pred_region
      _
    $region21: #{tpu_custom_call.1} parent=1 // pred_fallthru
      _
    // Predicated region
    $region22: #{tpu_custom_call.1} parent=1 // pred_check
      _
    $region23: #{tpu_custom_call.1} parent=1 // pred_check_branch
      %54 = sbr.rel (0) target = $region25
    $region24: #{tpu_custom_call.1} parent=1 // pred_region
      %56 = dma.done [#allocation3], 128
    $region25: #{tpu_custom_call.1} parent=1 // pred_fallthru
      _
    // Predicated region
    $region26: #{tpu_custom_call.1} parent=1 // pred_check
      _
    $region27: #{tpu_custom_call.1} parent=1 // pred_check_branch
      %58 = sbr.rel (0) target = $region29
    $region28: #{tpu_custom_call.1} parent=1 // pred_region
      %60 = dma.done [#allocation5], 256
    $region29: #{tpu_custom_call.1} parent=1 // pred_fallthru
      _
    // Predicated region
    $region30: #{tpu_custom_call.1} parent=1 // pred_check
      _
    $region31: #{tpu_custom_call.1} parent=1 // pred_check_branch
      %62 = sbr.rel (0) target = $region33
    $region32: #{tpu_custom_call.1} parent=1 // pred_region
      %64 = dma.done [#allocation5], 512
    $region33: #{tpu_custom_call.1} parent=1 // pred_fallthru
      _
    %v65 = vld [vmem:[#allocation2] sm:$0xff]
    %v66 = vld [vmem:[#allocation4] sm:$0xff]
    %v67 = vld [vmem:[#allocation4 + $0x8] sm:$0xff]
    %v68 = vld [vmem:[%s2] sm:$0x1]
    %v70 = vperm.slane %v68, 0
    %vm72 = vcmask 130048
    %v74 = vsel %vm72, %v65, 0
    %76 = vmatpush.msra.mxu0 0.0
    %77 = vmatpush.msra.mxu0 0.0
    %78 = vmatpush.msra.mxu0 0.0
    %79 = vmatpush.msra.mxu0 0.0
    %80 = vmatpush.msra.mxu0 0.0
    %81 = vmatpush.msra.mxu0 0.0
    %82 = vmatpush.msra.mxu0 0.0
    %83 = vmatpush.msra.mxu0 0.0
    %84 = vmatpush.msra.mxu0 0.0
    %85 = vmatpush.msra.mxu0 0.0
    %86 = vmatpush.msra.mxu0 0.0
    %87 = vmatpush.msra.mxu0 0.0
    %88 = vmatpush.msra.mxu0 0.0
    %89 = vmatpush.msra.mxu0 0.0
    %90 = vmatpush.msra.mxu0 %v67
    %91 = vmatpush.msra.mxu0 %v66
    %92 = vmatmul.f32.gmra.mxu0 %v74
    %v93 = vpop.f32.mrf.mxu0
    %v94 = vadd.f32 %v70, %v93
    %95 = vdwg.mxu0
    %v96 = vmax.f32 %v94, 0.0
    %v97 = vld [vmem:[#allocation6] sm:$0xff]
    %v98 = vld [vmem:[#allocation6 + $0x8] sm:$0xff]
    %v99 = vld [vmem:[#allocation6 + $0x10] sm:$0xff]
    %v100 = vld [vmem:[#allocation6 + $0x18] sm:$0xff]
    %v101 = vld [vmem:[%s4] sm:$0x1]
    %v103 = vperm.slane %v101, 0
    %vm105 = vcmask 261120
    %v107 = vsel %vm105, %v96, 0
    %109 = vmatpush.msra.mxu0 0.0
    %110 = vmatpush.msra.mxu0 0.0
    %111 = vmatpush.msra.mxu0 0.0
    %112 = vmatpush.msra.mxu0 0.0
    %113 = vmatpush.msra.mxu0 0.0
    %114 = vmatpush.msra.mxu0 0.0
    %115 = vmatpush.msra.mxu0 0.0
    %116 = vmatpush.msra.mxu0 0.0
    %117 = vmatpush.msra.mxu0 0.0
    %118 = vmatpush.msra.mxu0 0.0
    %119 = vmatpush.msra.mxu0 0.0
    %120 = vmatpush.msra.mxu0 0.0
    %121 = vmatpush.msra.mxu0 %v100
    %122 = vmatpush.msra.mxu0 %v99
    %123 = vmatpush.msra.mxu0 %v98
    %124 = vmatpush.msra.mxu0 %v97
    %125 = vmatmul.f32.gmra.mxu0 %v107
    %v126 = vpop.f32.mrf.mxu0
    %v127 = vadd.f32 %v103, %v126
    %128 = vdwg.mxu0
    %vm129 = vcmask 31744
    %v130 = vsel %vm129, %v127, -inf
    %131 = vmax.xlane.f32.xlu0 %v130
    %v132 = vpop.xlane.xlu0 %131
    %v133 = vsub.f32 %v127, %v132
    %v134 = vmul.f32 %v133, 1.442695
    %v135 = vpow.pop %v134
    %v136 = vsel %vm129, %v135, 0.0
    %137 = vadd.xlane.f32.xlu0 %v136
    %v138 = vpop.xlane.xlu0 %137
    %v139 = vrcp.pop %v138
    %v140 = vmul.f32 %v138, %v139
    %v141 = vsub.f32 1.0, %v140
    %v142 = vmul.f32 %v139, %v141
    %v143 = vadd.f32 %v139, %v142
    %vm144 = vweird.f32 %v138
    %vm145 = vweird.f32 %v139
    %vm146 = vmor %vm144, %vm145
    %v147 = vsel %vm146, %v139, %v143
    %v148 = vand.u32 2147483647, %v138
    %vm149 = vcmp.eq.f32.partialorder %v148, 8.507059e+37
    %v150 = vand.u32 %v138, 2147483648
    %v151 = vor.u32 1.1754944e-38, %v150
    %v152 = vsel %vm149, %v151, %v147
    %v153 = vmul.f32 %v135, %v152
    %154 = vst.msk [vmem:[%s5] sm:$0xff] %vm129, %v153
    // Predicated region
    $region34: #{tpu_custom_call.1} parent=1 // pred_check
      _
    $region35: #{tpu_custom_call.1} parent=1 // pred_check_branch
      %156 = sbr.rel (0) target = $region37
    $region36: #{tpu_custom_call.1} parent=1 // pred_region
      _
    $region37: #{tpu_custom_call.1} parent=1 // pred_fallthru
      _
    // Predicated region
    $region38: #{tpu_custom_call.1} parent=1 // pred_check
      _
    $region39: #{tpu_custom_call.1} parent=1 // pred_check_branch
      %158 = sbr.rel (0) target = $region41
    $region40: #{tpu_custom_call.1} parent=1 // pred_region
      _
    $region41: #{tpu_custom_call.1} parent=1 // pred_fallthru
      _
    %159 = vsyncpa [#allocation3], 1
    %160 = vsyncpa [#allocation5], 1

</llo_original>
